<compile_context>
chip_gen: v6e
topology: v6e:2x2x1
jax: 0.10.0
libtpu: 0.0.40
codegen_flags: <defaults>
</compile_context>

<pallas_src>
import jax
import jax.numpy as jnp
from jax.experimental import pallas as pl
from jax.experimental.pallas import tpu as pltpu


def _fused_kernel(xcol_ref, w_ref, o_ref):
    """One MXU matmul per HW tile: (C_out, K2*C0) @ (K2*C0, t_hw)."""
    o_ref[0] = jnp.dot(w_ref[...], xcol_ref[0],
                       preferred_element_type=jnp.float32).astype(o_ref.dtype)


def _shifted_views(x, ksize, stride, padding):
    """Pack the K^2 shifted (strided) taps into one (N, K^2*C, HW) slab.

    Tap ordering is (dy, dx)-major, channel-minor, matching the folded
    weight layout below.  Shifts are static XLA slices.
    """
    N, C, H, W = x.shape
    H_out = (H + 2 * padding - ksize) // stride + 1
    W_out = (W + 2 * padding - ksize) // stride + 1
    xp = jnp.pad(x, ((0, 0), (0, 0), (padding, padding), (padding, padding)))
    views = []
    for dy in range(ksize):
        for dx in range(ksize):
            v = jax.lax.slice(
                xp,
                (0, 0, dy, dx),
                (N, C, dy + stride * (H_out - 1) + 1,
                 dx + stride * (W_out - 1) + 1),
                (1, 1, stride, stride))
            views.append(v.reshape(N, C, H_out * W_out))
    xcol = jnp.stack(views, axis=1).reshape(
        N, ksize * ksize * C, H_out * W_out)
    return xcol, H_out, W_out


def _round_up(v, m):
    return (v + m - 1) // m * m


def _vmem_capacity_bytes():
    """Per-TensorCore VMEM capacity; conservative fallback if unavailable."""
    try:
        return int(pltpu.get_tpu_info().vmem_capacity_bytes)
    except Exception:
        return 64 << 20   # matches v7x per-TC VMEM; safe everywhere


def _pick_hw_tile(hw_out, n_batch, per_col_bytes, vmem_cap):
    """HW tile: multiple of 128 (or full extent), generation-aware sizing."""
    if hw_out <= 128:
        return hw_out                      # full-extent block: always legal
    # Wider lane tiles on 128-MiB parts (v5e/v6e), smaller cap on v7x.
    lane_cap = 16384 if vmem_cap >= (96 << 20) else 8192
    budget = vmem_cap // 5                 # block budget; headroom for Mosaic
    t = min(hw_out, lane_cap, max(128, budget // max(per_col_bytes, 1)))
    t = max(128, (t // 128) * 128)
    # Keep >= 4 total grid steps (>= 2 per v7x TensorCore) so the BlockSpec
    # double-buffer pipeline reaches steady state on both cores.
    min_steps = pl.cdiv(4, max(n_batch, 1))
    while t > 128 and pl.cdiv(hw_out, t) < min_steps:
        t -= 128
    return t


def gradual_bottleneck_forward(x, weights, *, ksize=3, stride=1, padding=1):
    """Fused Pallas forward for GradualBottleNeck.

    x:       (N, C_in, H, W) float32 (NCHW, PyTorch convention)
    weights: [w0 (C1, C_in, k, k)] + [wi (C_{i+1}, C_i, 1, 1), ...]
    returns  (N, C_out, H_out, W_out)
    """
    N, C0, H, W = x.shape
    w0 = weights[0]
    C1 = w0.shape[0]
    K2 = ksize * ksize

    # Fold the whole (activation-free) module into one effective weight:
    #   W_eff = W_n @ ... @ W_1 @ W0_flat, shape (C_out, K^2*C0),
    # with column index = (dy*K + dx)*C0 + c0 to match _shifted_views.
    w0_flat = jnp.transpose(w0, (0, 2, 3, 1)).reshape(C1, K2 * C0)
    w_eff = w0_flat
    for w in weights[1:]:
        w_eff = jnp.dot(w[:, :, 0, 0], w_eff,
                        precision=jax.lax.Precision.HIGHEST)
    C_out = w_eff.shape[0]
    # Sublane-align C_out so output stores stay unmasked (vst, not vst.msk).
    C_out_p = _round_up(C_out, 8)
    if C_out_p != C_out:
        w_eff = jnp.pad(w_eff, ((0, C_out_p - C_out), (0, 0)))

    xcol, H_out, W_out = _shifted_views(x, ksize, stride, padding)
    hw_out = H_out * W_out

    vmem_cap = _vmem_capacity_bytes()
    # Double-buffered input + output block bytes per lane column (f32).
    per_col_bytes = 4 * 2 * (_round_up(K2 * C0, 8) + C_out_p)
    t_hw = _pick_hw_tile(hw_out, N, per_col_bytes, vmem_cap)
    grid = (N, pl.cdiv(hw_out, t_hw))

    out2d = pl.pallas_call(
        _fused_kernel,
        out_shape=jax.ShapeDtypeStruct((N, C_out_p, hw_out), x.dtype),
        grid_spec=pltpu.PrefetchScalarGridSpec(
            num_scalar_prefetch=0,
            grid=grid,
            in_specs=[
                pl.BlockSpec((1, K2 * C0, t_hw), lambda n, j: (n, 0, j)),
                pl.BlockSpec((C_out_p, K2 * C0), lambda n, j: (0, 0)),
            ],
            out_specs=pl.BlockSpec((1, C_out_p, t_hw), lambda n, j: (n, 0, j)),
        ),
        compiler_params=pltpu.CompilerParams(
            dimension_semantics=("parallel", "parallel"),
            vmem_limit_bytes=vmem_cap // 2,   # 32 MiB on v7x, 64 MiB v5e/v6e
        ),
    )(xcol, w_eff)

    if C_out_p != C_out:
        out2d = out2d[:, :C_out, :]
    # (N, C_out, HW) -> (N, C_out, H_out, W_out): metadata-only reshape.
    return out2d.reshape(N, C_out, H_out, W_out)


class GradualBottleNeckPallas:
    """JAX/Pallas equivalent of pn.networks.poolnet.GradualBottleNeck."""

    def __init__(self, inchannel, outchannel, lines, key,
                 origin_kernel=3, origin_stride=1, origin_padding=1):
        chans = [inchannel] + list(lines) + [outchannel]
        self.ksize = origin_kernel
        self.stride = origin_stride
        self.padding = origin_padding
        self.weights = []
        for i in range(len(chans) - 1):
            kk = origin_kernel if i == 0 else 1
            fan_in = chans[i] * kk * kk
            bound = 1.0 / (fan_in ** 0.5)       # kaiming-uniform-like scale
            key, sub = jax.random.split(key)
            w = jax.random.uniform(
                sub, (chans[i + 1], chans[i], kk, kk), dtype=jnp.float32,
                minval=-bound, maxval=bound)
            self.weights.append(w)

    def __call__(self, x):
        return gradual_bottleneck_forward(
            x, self.weights, ksize=self.ksize,
            stride=self.stride, padding=self.padding)


def _reference(x, weights, ksize, stride, padding):
    """Plain-XLA reference (high precision) matching the PyTorch forward."""
    y = jax.lax.conv_general_dilated(
        x, weights[0], window_strides=(stride, stride),
        padding=[(padding, padding), (padding, padding)],
        dimension_numbers=("NCHW", "OIHW", "NCHW"),
        precision=jax.lax.Precision.HIGHEST)
    for w in weights[1:]:
        y = jnp.einsum("oc,nchw->nohw", w[:, :, 0, 0], y,
                       precision=jax.lax.Precision.HIGHEST)
    return y


if __name__ == "__main__":
    key = jax.random.PRNGKey(0)
    k_param, k_x = jax.random.split(key)

    # Small synthetic config: inchannel=4, lines=[8, 16], outchannel=32.
    inchannel, outchannel, lines = 4, 32, [8, 16]
    layer = GradualBottleNeckPallas(inchannel, outchannel, lines, k_param)

    x = jax.random.normal(k_x, (2, 4, 16, 16), dtype=jnp.float32)

    out = layer(x)
    out = jax.block_until_ready(out)

    ref = _reference(x, layer.weights, layer.ksize, layer.stride, layer.padding)
    assert out.shape == ref.shape, (out.shape, ref.shape)
    assert jnp.max(jnp.abs(out - ref)) < 1e-3

    print("KERNEL_OK")
</pallas_src>

<mosaic_0001>
module attributes {stable_mosaic.version = 11 : i64} {
  func.func @_fused_kernel(%arg0: i32, %arg1: i32, %arg2: memref<1x36x128xf32, #tpu.memory_space<vmem>>, %arg3: memref<32x36xf32, #tpu.memory_space<vmem>>, %arg4: memref<1x32x128xf32, #tpu.memory_space<vmem>>) attributes {dimension_semantics = [#tpu.dimension_semantics<parallel>, #tpu.dimension_semantics<parallel>], iteration_bounds = array<i64: 2, 2>, scalar_prefetch = 0 : i64, scratch_operands = 0 : i64, tpu.core_type = #tpu.core_type<tc>, window_params = [{transform_indices = @transform_0, window_bounds = array<i64: 1, 36, 128>}, {pipeline_mode = #tpu.pipeline_mode<synchronous>, transform_indices = @transform_1, window_bounds = array<i64: 32, 36>}, {transform_indices = @transform_2, window_bounds = array<i64: 1, 32, 128>}]} {
    %c0 = arith.constant 0 : index
    %c0_0 = arith.constant 0 : index
    %0 = vector.load %arg3[%c0, %c0_0] : memref<32x36xf32, #tpu.memory_space<vmem>>, vector<32x36xf32>
    %c0_1 = arith.constant 0 : index
    %c0_2 = arith.constant 0 : index
    %c0_3 = arith.constant 0 : index
    %1 = vector.load %arg2[%c0_1, %c0_2, %c0_3] : memref<1x36x128xf32, #tpu.memory_space<vmem>>, vector<1x36x128xf32>
    %2 = vector.shape_cast %1 : vector<1x36x128xf32> to vector<36x128xf32>
    %cst = arith.constant dense<0.000000e+00> : vector<32x128xf32>
    %3 = tpu.matmul %0, %2, %cst {dimension_numbers = #tpu.dot_dimension_numbers<[1], [0], [0], [1], [0, 0, 1, 1], [], []>} : vector<32x36xf32>, vector<36x128xf32>, vector<32x128xf32> -> vector<32x128xf32>
    %c0_4 = arith.constant 0 : index
    %c0_5 = arith.constant 0 : index
    %c0_6 = arith.constant 0 : index
    %4 = vector.load %arg4[%c0_4, %c0_5, %c0_6] : memref<1x32x128xf32, #tpu.memory_space<vmem>>, vector<1x32x128xf32>
    %5 = vector.shape_cast %4 : vector<1x32x128xf32> to vector<32x128xf32>
    %6 = vector.shape_cast %3 : vector<32x128xf32> to vector<1x32x128xf32>
    tpu.vector_store %arg4[%c0_4, %c0_5, %c0_6], %6 {strides = array<i32>} : memref<1x32x128xf32, #tpu.memory_space<vmem>>, vector<1x32x128xf32>,
    return
  }
  func.func @transform_0(%arg0: i32, %arg1: i32) -> (i32, i32, i32) {
    %c0_i32 = arith.constant 0 : i32
    %c0_i32_0 = arith.constant 0 : i32
    return %arg0, %c0_i32, %arg1 : i32, i32, i32
  }
  func.func @transform_1(%arg0: i32, %arg1: i32) -> (i32, i32) {
    %c0_i32 = arith.constant 0 : i32
    %c0_i32_0 = arith.constant 0 : i32
    %c0_i32_1 = arith.constant 0 : i32
    return %c0_i32, %c0_i32_0 : i32, i32
  }
  func.func @transform_2(%arg0: i32, %arg1: i32) -> (i32, i32, i32) {
    %c0_i32 = arith.constant 0 : i32
    %c0_i32_0 = arith.constant 0 : i32
    return %arg0, %c0_i32, %arg1 : i32, i32, i32
  }
}

</mosaic_0001>

<llo_original>
// kernel: tpu_custom_call.1
$region0: #{tpu_custom_call.1}
  #allocation0 [shape = 'u32[]', space=smem, size = 0x4, offset = 0x4, fixed_abs, tag = 'smem constant byte address 0x4 - core index']
  #allocation1 [shape = 'u32[144,128]{1,0:T(1,128)}', space=vmem, size = 0x12000, scoped, tag = 'internal scratch']
  %s0 = inlined_call_operand.vmem [shape: f32[2,36,256], index: 0, kind: input, shape index: {}]
  %s1 = inlined_call_operand.vmem [shape: f32[32,36], index: 1, kind: input, shape index: {}]
  %s2 = inlined_call_operand.hbm [shape: f32[2,32,256], index: 2, kind: output, shape index: {}]
  %s3 = sld [smem:[#allocation0]]
  $region79: #{tpu_custom_call.1} parent=0
    _
  %s5 = ssub.s32 1, %s3
  %s6 = scalar_select 0, %s5, %s3
  $region1: #{tpu_custom_call.1} parent=0
    #allocation2 [shape = 'u8[40960]{0}', space=vmem, size = 0xa000, scoped, tag = 'input window, operand 0']
    #allocation3 [shape = 'u8[32768]{0}', space=vmem, size = 0x8000, scoped, tag = 'output window, operand 0']
    #allocation4 [shape = 's32[2]{0}', space=sflag, size = 0x8, scoped, tag = 'scoped memory for tpu_custom_call.1']
    %7 = vsyncpa [#allocation4], 0
    %s8 = scalar_lea.sflag [#allocation4], 1
    %9 = vsyncpa %s8, 0
    loop: start=0, step=1, limit=6
    $region2: #{tpu_custom_call.1} parent=1 // loop_pre_header
      _
    $region3: #{tpu_custom_call.1} parent=1 // loop_header
      %s11 = sphi 0, %s15
      %p12 = scmp.ge.s32.totalorder %s11, 6
      %s18 = sphi 0, %s30
      %s19 = sphi 0, %s26
      %s20 = sphi 0, %s18
      %s21 = sphi 0, %s19
      %s22 = sphi 0, %s20
      %s23 = sphi 0, %s21
      %s35 = sphi 0, %s37
      %s38 = sphi 0, %s35
      %s39 = sphi 0, %s38
      %s55 = sphi 0, %s39
      %s59 = sphi 0, %s59
      %s61 = sphi 0, %s59
      %s62 = sphi 0, %s61
      %s76 = sphi 0, %s62
      %s84 = sphi 0, %s86
      %s87 = sphi 0, %s84
      %s88 = sphi 0, %s87
      %s104 = sphi 0, %s88
    $region4: #{tpu_custom_call.1} parent=1 // loop_header_branch
      %14 = sbr.rel (%p12) target = $region8
    $region5: #{tpu_custom_call.1} parent=1 // loop_body
      %s16 = ssub.s32 %s11, 1
      %s17 = ssub.s32 %s11, 2
      %s24 = sadd.s32 1, %s19
      %p25 = scmp.ge.s32.totalorder %s24, 2
      %s26 = scalar_select %p25, 0, %s24
      %s27 = sadd.s32 1, %s18
      %s28 = scalar_select %p25, %s27, %s18
      %p29 = scmp.ge.s32.totalorder %s28, 2
      %s30 = scalar_select %p29, 0, %s28
      %s31 = ssub.s32 %s18, %s30
      %s32 = ssub.s32 %s19, %s26
      %s33 = sor.u32 %s31, %s32
      %p34 = scmp.eq.s32.totalorder %s33, 0
      %s36 = sadd.s32 %s35, 1
      %s37 = scalar_select %p34, %s35, %s36
      %p40 = pneg %p34
      %p41 = scmp.eq.s32.totalorder %s11, 3
      %p42 = por %p40, %p41
      %p43 = scmp.ne.s32.totalorder %s35, %s38
      %p44 = scmp.eq.s32.totalorder %s11, 0
      %p45 = por %p43, %p44
      %p46 = scmp.ne.s32.totalorder %s35, %s38
      %p47 = scmp.eq.s32.totalorder %s16, 3
      %p48 = por %p46, %p47
      %p49 = scmp.ne.s32.totalorder %s38, %s39
      %p50 = scmp.eq.s32.totalorder %s16, 0
      %p51 = por %p49, %p50
      %p52 = scmp.ne.s32.totalorder %s38, %s39
      %p53 = scmp.eq.s32.totalorder %s17, 3
      %p54 = por %p52, %p53
      %p56 = scmp.ne.s32.totalorder %s39, %s55
      %p57 = scmp.eq.s32.totalorder %s17, 0
      %p58 = por %p56, %p57
      %s60 = sadd.s32 %s59, 1
      %p63 = scmp.eq.s32.totalorder %s11, 3
      %p64 = scmp.ne.s32.totalorder %s59, %s61
      %p65 = scmp.eq.s32.totalorder %s11, 0
      %p66 = por %p64, %p65
      %p67 = scmp.ne.s32.totalorder %s59, %s61
      %p68 = scmp.eq.s32.totalorder %s16, 3
      %p69 = por %p67, %p68
      %p70 = scmp.ne.s32.totalorder %s61, %s62
      %p71 = scmp.eq.s32.totalorder %s16, 0
      %p72 = por %p70, %p71
      %p73 = scmp.ne.s32.totalorder %s61, %s62
      %p74 = scmp.eq.s32.totalorder %s17, 3
      %p75 = por %p73, %p74
      %p77 = scmp.ne.s32.totalorder %s62, %s76
      %p78 = scmp.eq.s32.totalorder %s17, 0
      %p79 = por %p77, %p78
      %s80 = ssub.s32 %s18, %s30
      %s81 = ssub.s32 %s19, %s26
      %s82 = sor.u32 %s80, %s81
      %p83 = scmp.eq.s32.totalorder %s82, 0
      %s85 = sadd.s32 %s84, 1
      %s86 = scalar_select %p83, %s84, %s85
      %p89 = pneg %p83
      %p90 = scmp.eq.s32.totalorder %s11, 3
      %p91 = por %p89, %p90
      %p92 = scmp.ne.s32.totalorder %s84, %s87
      %p93 = scmp.eq.s32.totalorder %s11, 0
      %p94 = por %p92, %p93
      %p95 = scmp.ne.s32.totalorder %s84, %s87
      %p96 = scmp.eq.s32.totalorder %s16, 3
      %p97 = por %p95, %p96
      %p98 = scmp.ne.s32.totalorder %s87, %s88
      %p99 = scmp.eq.s32.totalorder %s16, 0
      %p100 = por %p98, %p99
      %p101 = scmp.ne.s32.totalorder %s87, %s88
      %p102 = scmp.eq.s32.totalorder %s17, 3
      %p103 = por %p101, %p102
      %p105 = scmp.ne.s32.totalorder %s88, %s104
      %p106 = scmp.eq.s32.totalorder %s17, 0
      %p107 = por %p105, %p106
      %p108 = scmp.le.s32.totalorder 1, %s11
      %p109 = scmp.lt.s32.totalorder %s11, 5
      %p110 = pnand %p108, %p109
      %p111 = pneg %p110
      // Predicated region
      $region9: #{tpu_custom_call.1} parent=5 // pred_check
        _
      $region10: #{tpu_custom_call.1} parent=5 // pred_check_branch
        %113 = sbr.rel (%p110) target = $region12
      $region11: #{tpu_custom_call.1} parent=5 // pred_region
        %s114 = ssub.s32 %s11, 1
        // Predicated region
        $region13: #{tpu_custom_call.1} parent=11 // pred_check
          %p115 = pneg %p72
        $region14: #{tpu_custom_call.1} parent=11 // pred_check_branch
          %117 = sbr.rel (%p115) target = $region16
        $region15: #{tpu_custom_call.1} parent=11 // pred_region
          _
        $region16: #{tpu_custom_call.1} parent=11 // pred_fallthru
          _
      $region12: #{tpu_custom_call.1} parent=5 // pred_fallthru
        _
      %p118 = scmp.lt.s32.totalorder %s11, 4
      // Predicated region
      $region17: #{tpu_custom_call.1} parent=5 // pred_check
        %p119 = pneg %p118
      $region18: #{tpu_custom_call.1} parent=5 // pred_check_branch
        %121 = sbr.rel (%p119) target = $region20
      $region19: #{tpu_custom_call.1} parent=5 // pred_region
        // Predicated region
        $region21: #{tpu_custom_call.1} parent=19 // pred_check
          %p122 = pneg %p45
        $region22: #{tpu_custom_call.1} parent=19 // pred_check_branch
          %124 = sbr.rel (%p122) target = $region24
        $region23: #{tpu_custom_call.1} parent=19 // pred_region
          %s125 = sand.u32 %s35, 1
          %s126 = sand.u32 %s35, 1
          %s127 = smul.addr %s126, 40
          %s128 = scalar_lea.vmem [#allocation2], %s127
          %s129 = smul.addr %s18, 10
          %s130 = sadd.s32 %s19, %s129
          %s131 = smul.addr %s130, 8
          %s132 = scalar_lea.vmem %s0, %s131
          // Predicated region
          $region25: #{tpu_custom_call.1} parent=23 // pred_check
            _
          $region26: #{tpu_custom_call.1} parent=23 // pred_check_branch
            %134 = sbr.rel (0) target = $region28
          $region27: #{tpu_custom_call.1} parent=23 // pred_region
            // Predicated region
            $region29: #{tpu_custom_call.1} parent=27 // pred_check
              _
            $region30: #{tpu_custom_call.1} parent=27 // pred_check_branch
              %136 = sbr.rel (0) target = $region32
            $region31: #{tpu_custom_call.1} parent=27 // pred_region
              // Predicated region
              $region44: #{tpu_custom_call.1} parent=31 // pred_check
                _
              $region45: #{tpu_custom_call.1} parent=31 // pred_check_branch
                %160 = sbr.rel (0) target = $region47
              $region46: #{tpu_custom_call.1} parent=31 // pred_region
                loop: start=0, step=1, limit=1
                $region48: #{tpu_custom_call.1} parent=46 // loop_pre_header
                  _
                $region49: #{tpu_custom_call.1} parent=46 // loop_header
                  %s162 = sphi 0, %s166
                  %p163 = scmp.ge.s32.totalorder %s162, 1
                  %s167 = sphi %s132, %s132
                  %s168 = sphi %s128, %s128
                $region50: #{tpu_custom_call.1} parent=46 // loop_header_branch
                  %165 = sbr.rel (%p163) target = $region54
                $region51: #{tpu_custom_call.1} parent=46 // loop_body
                  %v169 = vld [vmem:[%s167] sm:$0xff]
                  %170 = vst [vmem:[%s168] sm:$0xff] %v169
                  %v171 = vld [vmem:[%s167 + $0x10] sm:$0xff]
                  %172 = vst [vmem:[%s168 + $0x8] sm:$0xff] %v171
                  %v173 = vld [vmem:[%s167 + $0x20] sm:$0xff]
                  %174 = vst [vmem:[%s168 + $0x10] sm:$0xff] %v173
                  %v175 = vld [vmem:[%s167 + $0x30] sm:$0xff]
                  %176 = vst [vmem:[%s168 + $0x18] sm:$0xff] %v175
                  %v177 = vld [vmem:[%s167 + $0x40] sm:$0xff]
                  %178 = vst [vmem:[%s168 + $0x20] sm:$0xff] %v177
                $region52: #{tpu_custom_call.1} parent=46 // loop_footer
                  %s166 = sadd.s32 1, %s162
                $region53: #{tpu_custom_call.1} parent=46 // loop_footer_branch
                  %161 = sbr.rel target = $region49
                $region54: #{tpu_custom_call.1} parent=46 // loop_exit
                  _
              $region47: #{tpu_custom_call.1} parent=31 // pred_fallthru
                _
              // Predicated region
              $region55: #{tpu_custom_call.1} parent=31 // pred_check
                _
              $region56: #{tpu_custom_call.1} parent=31 // pred_check_branch
                %180 = sbr.rel target = $region58
              $region57: #{tpu_custom_call.1} parent=31 // pred_region
                _
              $region58: #{tpu_custom_call.1} parent=31 // pred_fallthru
                _
            $region32: #{tpu_custom_call.1} parent=27 // pred_fallthru
              _
            // Predicated region
            $region33: #{tpu_custom_call.1} parent=27 // pred_check
              _
            $region34: #{tpu_custom_call.1} parent=27 // pred_check_branch
              %138 = sbr.rel target = $region36
            $region35: #{tpu_custom_call.1} parent=27 // pred_region
              %s140 = ssub.s32 256, 1
              loop: start=0, step=1, limit=1
              $region37: #{tpu_custom_call.1} parent=35 // loop_pre_header
                _
              $region38: #{tpu_custom_call.1} parent=35 // loop_header
                %s142 = sphi 0, %s146
                %p143 = scmp.ge.s32.totalorder %s142, 1
                %s147 = sphi %s132, %s132
                %s148 = sphi %s128, %s128
              $region39: #{tpu_custom_call.1} parent=35 // loop_header_branch
                %145 = sbr.rel (%p143) target = $region43
              $region40: #{tpu_custom_call.1} parent=35 // loop_body
                %v149 = vld [vmem:[%s147] sm:%s140]
                %150 = vst [vmem:[%s148] sm:%s140] %v149
                %v151 = vld [vmem:[%s147 + $0x10] sm:%s140]
                %152 = vst [vmem:[%s148 + $0x8] sm:%s140] %v151
                %v153 = vld [vmem:[%s147 + $0x20] sm:%s140]
                %154 = vst [vmem:[%s148 + $0x10] sm:%s140] %v153
                %v155 = vld [vmem:[%s147 + $0x30] sm:%s140]
                %156 = vst [vmem:[%s148 + $0x18] sm:%s140] %v155
                %v157 = vld [vmem:[%s147 + $0x40] sm:%s140]
                %158 = vst [vmem:[%s148 + $0x20] sm:%s140] %v157
              $region41: #{tpu_custom_call.1} parent=35 // loop_footer
                %s146 = sadd.s32 1, %s142
              $region42: #{tpu_custom_call.1} parent=35 // loop_footer_branch
                %141 = sbr.rel target = $region38
              $region43: #{tpu_custom_call.1} parent=35 // loop_exit
                _
            $region36: #{tpu_custom_call.1} parent=27 // pred_fallthru
              _
          $region28: #{tpu_custom_call.1} parent=23 // pred_fallthru
            _
          %181 = vnop
        $region24: #{tpu_custom_call.1} parent=19 // pred_fallthru
          _
      $region20: #{tpu_custom_call.1} parent=5 // pred_fallthru
        _
      %p182 = scmp.le.s32.totalorder 1, %s11
      %p183 = scmp.lt.s32.totalorder %s11, 5
      %p184 = pnand %p182, %p183
      %p185 = pneg %p184
      // Predicated region
      $region59: #{tpu_custom_call.1} parent=5 // pred_check
        _
      $region60: #{tpu_custom_call.1} parent=5 // pred_check_branch
        %187 = sbr.rel (%p184) target = $region62
      $region61: #{tpu_custom_call.1} parent=5 // pred_region
        %s188 = ssub.s32 %s11, 1
        %s189 = sand.u32 %s38, 1
        %s190 = sand.u32 %s38, 1
        %s191 = smul.addr %s190, 40
        %s192 = scalar_lea.vmem [#allocation2], %s191
        // Predicated region
        $region63: #{tpu_custom_call.1} parent=61 // pred_check
          %p193 = pneg %p51
        $region64: #{tpu_custom_call.1} parent=61 // pred_check_branch
          %195 = sbr.rel (%p193) target = $region66
        $region65: #{tpu_custom_call.1} parent=61 // pred_region
          _
        $region66: #{tpu_custom_call.1} parent=61 // pred_fallthru
          _
        %s196 = sand.u32 %s38, 1
        %s197 = sand.u32 %s38, 1
        %s198 = smul.addr %s197, 40
        %s199 = scalar_lea.vmem [#allocation2], %s198
        %p200 = pneg %p51
        %p201 = pneg %p48
        %p202 = pneg %p72
        %p203 = pneg %p69
        %p204 = pneg %p100
        %p205 = pneg %p97
        %s206 = sand.u32 %s87, 1
        %s207 = scalar_lea.sflag [#allocation4], %s206
        %s208 = sand.u32 %s87, 1
        %s209 = smul.addr %s208, 32
        %s210 = scalar_lea.vmem [#allocation3], %s209
        %v211 = vld [vmem:[%s1] sm:$0xff]
        %v212 = vld [vmem:[%s1 + $0x8] sm:$0xff]
        %v213 = vld [vmem:[%s1 + $0x10] sm:$0xff]
        %v214 = vld [vmem:[%s1 + $0x18] sm:$0xff]
        %v215 = vld [vmem:[%s192] sm:$0xff]
        %v216 = vld [vmem:[%s192 + $0x8] sm:$0xff]
        %v217 = vld [vmem:[%s192 + $0x10] sm:$0xff]
        %v218 = vld [vmem:[%s192 + $0x18] sm:$0xff]
        %v219 = vld [vmem:[%s192 + $0x20] sm:$0xf]
        %vm220 = vcmask 293888
        %v222 = vsel %vm220, %v211, 0
        %v225 = vsel %vm220, %v212, 0
        %v228 = vsel %vm220, %v213, 0
        %v231 = vsel %vm220, %v214, 0
        %vm233 = vcmask 1043456
        %v235 = vsel %vm233, %v219, 0
        %237 = vmatprep.subr.mxu0 0.0
        %238 = vmatpush1.msra.mxu0 0.0
        %239 = vmatprep.subr.mxu0 0.0
        %240 = vmatpush1.msra.mxu0 0.0
        %241 = vmatprep.subr.mxu0 0.0
        %242 = vmatpush1.msra.mxu0 0.0
        %243 = vmatprep.subr.mxu0 0.0
        %244 = vmatpush1.msra.mxu0 0.0
        %245 = vmatprep.subr.mxu0 0.0
        %246 = vmatpush1.msra.mxu0 0.0
        %247 = vmatprep.subr.mxu0 0.0
        %248 = vmatpush1.msra.mxu0 0.0
        %249 = vmatprep.subr.mxu0 0.0
        %250 = vmatpush1.msra.mxu0 0.0
        %251 = vmatprep.subr.mxu0 0.0
        %252 = vmatpush1.msra.mxu0 0.0
        %253 = vmatprep.subr.mxu0 0.0
        %254 = vmatpush1.msra.mxu0 0.0
        %255 = vmatprep.subr.mxu0 0.0
        %256 = vmatpush1.msra.mxu0 0.0
        %257 = vmatprep.subr.mxu0 0.0
        %258 = vmatpush1.msra.mxu0 0.0
        %259 = vmatprep.subr.mxu0 0.0
        %260 = vmatpush1.msra.mxu0 %v235
        %261 = vmatprep.subr.mxu0 0.0
        %262 = vmatpush1.msra.mxu0 %v218
        %263 = vmatprep.subr.mxu0 0.0
        %264 = vmatpush1.msra.mxu0 %v217
        %265 = vmatprep.subr.mxu0 0.0
        %266 = vmatpush1.msra.mxu0 %v216
        %267 = vmatprep.subr.mxu0 0.0
        %268 = vmatpush1.msra.mxu0 %v215
        %269 = vmatprep.subr.mxu0 0.0
        %270 = vmatpush2.msra.mxu0 0.0
        %271 = vmatprep.subr.mxu0 0.0
        %272 = vmatpush2.msra.mxu0 0.0
        %273 = vmatprep.subr.mxu0 0.0
        %274 = vmatpush2.msra.mxu0 0.0
        %275 = vmatprep.subr.mxu0 0.0
        %276 = vmatpush2.msra.mxu0 0.0
        %277 = vmatprep.subr.mxu0 0.0
        %278 = vmatpush2.msra.mxu0 0.0
        %279 = vmatprep.subr.mxu0 0.0
        %280 = vmatpush2.msra.mxu0 0.0
        %281 = vmatprep.subr.mxu0 0.0
        %282 = vmatpush2.msra.mxu0 0.0
        %283 = vmatprep.subr.mxu0 0.0
        %284 = vmatpush2.msra.mxu0 0.0
        %285 = vmatprep.subr.mxu0 0.0
        %286 = vmatpush2.msra.mxu0 0.0
        %287 = vmatprep.subr.mxu0 0.0
        %288 = vmatpush2.msra.mxu0 0.0
        %289 = vmatprep.subr.mxu0 0.0
        %290 = vmatpush2.msra.mxu0 0.0
        %291 = vmatprep.subr.mxu0 0.0
        %292 = vmatpush2.msra.mxu0 0.0
        %293 = vmatprep.subr.mxu0 0.0
        %294 = vmatpush2.msra.mxu0 0.0
        %295 = vmatprep.subr.mxu0 0.0
        %296 = vmatpush2.msra.mxu0 0.0
        %297 = vmatprep.subr.mxu0 0.0
        %298 = vmatpush2.msra.mxu0 0.0
        %299 = vmatprep.subr.mxu0 0.0
        %300 = vmatpush2.msra.mxu0 0.0
        %301 = vmatprep.mubr.f32.mxu0 0.0
        %302 = vmatmul.mubr.f32.gmra.mxu0 %v222
        %v303 = vpop.f32.mrf.mxu0
        %v304 = vadd.f32 0.0, %v303
        %v305 = vpop.f32.mrf.mxu0
        %306 = vmatprep.mubr.f32.mxu0 0.0
        %307 = vmatmul.mubr.f32.gmra.mxu0 %v225
        %v308 = vpop.f32.mrf.mxu0
        %v309 = vadd.f32 0.0, %v308
        %v310 = vpop.f32.mrf.mxu0
        %311 = vmatprep.mubr.f32.mxu0 0.0
        %312 = vmatmul.mubr.f32.gmra.mxu0 %v228
        %v313 = vpop.f32.mrf.mxu0
        %v314 = vadd.f32 0.0, %v313
        %v315 = vpop.f32.mrf.mxu0
        %316 = vmatprep.mubr.f32.mxu0 0.0
        %317 = vmatmul.mubr.f32.gmra.mxu0 %v231
        %v318 = vpop.f32.mrf.mxu0
        %v319 = vadd.f32 0.0, %v318
        %v320 = vpop.f32.mrf.mxu0
        %321 = vdwg.mxu0
        %322 = vst [vmem:[%s210] sm:$0xff] %v304
        %323 = vst [vmem:[%s210 + $0x8] sm:$0xff] %v309
        %324 = vst [vmem:[%s210 + $0x10] sm:$0xff] %v314
        %325 = vst [vmem:[%s210 + $0x18] sm:$0xff] %v319
        %s326 = sand.u32 %s87, 1
        %s327 = scalar_lea.sflag [#allocation4], %s326
        %s328 = sand.u32 %s87, 1
        %s329 = smul.addr %s328, 32
        %s330 = scalar_lea.vmem [#allocation3], %s329
        // Predicated region
        $region67: #{tpu_custom_call.1} parent=61 // pred_check
          %p331 = pneg %p97
        $region68: #{tpu_custom_call.1} parent=61 // pred_check_branch
          %333 = sbr.rel (%p331) target = $region70
        $region69: #{tpu_custom_call.1} parent=61 // pred_region
          %s335 = ssub.s32 512, 512
          %336 = vsyncadd %s327, %s335
          %s337 = smul.addr %s20, 8
          %s338 = sadd.s32 %s21, %s337
          %s339 = smul.addr %s338, 128
          %s340 = scalar_lea.hbm %s2, %s339
          %s341 = sshll.u32 %s330, 4
          %s342 = int_to_ptr.vmem [resolvable:$true] %s341
          %347 = dma.vmem_to_hbm [thread:$0]  %s342, 512, %s340, %s327, 128, 256, 8
        $region70: #{tpu_custom_call.1} parent=61 // pred_fallthru
          _
      $region62: #{tpu_custom_call.1} parent=5 // pred_fallthru
        _
      %p348 = scmp.le.s32.totalorder 2, %s11
      // Predicated region
      $region71: #{tpu_custom_call.1} parent=5 // pred_check
        %p349 = pneg %p348
      $region72: #{tpu_custom_call.1} parent=5 // pred_check_branch
        %351 = sbr.rel (%p349) target = $region74
      $region73: #{tpu_custom_call.1} parent=5 // pred_region
        %s352 = ssub.s32 %s11, 2
        // Predicated region
        $region75: #{tpu_custom_call.1} parent=73 // pred_check
          %p353 = pneg %p103
        $region76: #{tpu_custom_call.1} parent=73 // pred_check_branch
          %355 = sbr.rel (%p353) target = $region78
        $region77: #{tpu_custom_call.1} parent=73 // pred_region
          %s356 = sand.u32 %s88, 1
          %s357 = scalar_lea.sflag [#allocation4], %s356
          %s358 = sand.u32 %s88, 1
          %s359 = smul.addr %s358, 32
          %s360 = scalar_lea.vmem [#allocation3], %s359
          %361 = dma.done %s357, 512
        $region78: #{tpu_custom_call.1} parent=73 // pred_fallthru
          _
      $region74: #{tpu_custom_call.1} parent=5 // pred_fallthru
        _
    $region6: #{tpu_custom_call.1} parent=1 // loop_footer
      %s15 = sadd.s32 1, %s11
    $region7: #{tpu_custom_call.1} parent=1 // loop_footer_branch
      %10 = sbr.rel target = $region3
    $region8: #{tpu_custom_call.1} parent=1 // loop_exit
      _
    %362 = vsyncpa [#allocation4], 1
    %s363 = scalar_lea.sflag [#allocation4], 1
    %364 = vsyncpa %s363, 1

</llo_original>
